<compile_context>
chip_gen: v7x
topology: tpu7x:2x2x1
jax: 0.10.0
libtpu: 0.0.40
codegen_flags: <defaults>
</compile_context>

<pallas_src>
import jax
import jax.numpy as jnp
from jax import lax
from jax.experimental import pallas as pl
from jax.experimental.pallas import tpu as pltpu


def discriminator_kernel(x_ref, w1_ref, b1_ref, w2t_ref, b2_ref, out_ref):
    # x_ref:   (TM, F)  bf16  rows of cat([h, y])
    # w1_ref:  (F, H)   bf16  first Linear weight (resident across grid steps)
    # b1_ref:  (1, H)   f32
    # w2t_ref: (8, H)   f32   row 0 = w2^T, rows 1..7 are zero padding
    # b2_ref:  (1, 1)   f32   SMEM scalar
    # out_ref: (8, TM)  f32   transposed output slab; only row 0 is meaningful
    z = jnp.dot(x_ref[...], w1_ref[...],
                preferred_element_type=jnp.float32)          # (TM, H) MXU, f32 acc
    z = jnp.maximum(z + b1_ref[...], 0.0)                    # bias + ReLU (VPU)

    # Layer 2, transposed epilogue: contract w2t (8, H) with z (TM, H) on H
    # (A @ B^T, the standard NT matmul) -> lane-dense (8, TM) result.
    o = lax.dot_general(w2t_ref[...], z, (((1,), (1,)), ((), ())),
                        preferred_element_type=jnp.float32)
    o = o + b2_ref[0, 0]

    # Sigmoid: exp on EUP, exact reciprocal (divide also off the hot VALU path).
    out_ref[...] = pl.reciprocal(1.0 + jnp.exp(-o))


def discriminator_forward(h, y, w1, b1, w2, b2, *, block_m=512):
    """h: (B, S, h_size), y: (B, S, y_size).
    w1: (h_size + y_size, 64), b1: (64,), w2: (64, 1), b2: (1,).
    Returns sigmoid(relu(cat([h, y]) @ w1 + b1) @ w2 + b2): (B, S, 1)."""
    B, S, h_size = h.shape
    y_size = y.shape[2]
    F = h_size + y_size
    H = w1.shape[1]
    assert w1.shape == (F, H) and b1.shape == (H,)
    assert w2.shape == (H, 1) and b2.shape == (1,)
    assert block_m % 128 == 0

    M = B * S
    # Row tile: multiple of 128 so the transposed (8, TM) output is lane-dense
    # (and a multiple of 16 for bf16 sublane packing). Single block for tiny M.
    TM = max(128, min(block_m, ((M + 127) // 128) * 128))
    M_pad = pl.cdiv(M, TM) * TM

    # Fold the concat in the wrapper -> one K=F matmul in the kernel; cast the
    # streamed operands to bf16 to halve input HBM bytes (MXU-native).
    x = jnp.concatenate([h, y], axis=2).reshape(M, F)
    if M_pad != M:
        x = jnp.pad(x, ((0, M_pad - M), (0, 0)))
    x = x.astype(jnp.bfloat16)
    w1b = w1.astype(jnp.bfloat16)
    b1r = b1.reshape(1, H).astype(jnp.float32)
    # Second layer, transposed and sublane-padded: row 0 holds w2^T.
    w2t = jnp.zeros((8, H), jnp.float32).at[0, :].set(w2[:, 0].astype(jnp.float32))
    b2s = b2.reshape(1, 1).astype(jnp.float32)

    grid = (M_pad // TM,)
    flops = 2 * M_pad * F * H + 2 * M_pad * H * 8
    bytes_accessed = (2 * M_pad * F          # x (bf16)
                      + 2 * F * H + 4 * H    # w1 (bf16), b1
                      + 4 * 8 * H + 4        # w2t, b2
                      + 4 * 8 * M_pad)       # transposed output

    out_t = pl.pallas_call(
        discriminator_kernel,
        out_shape=jax.ShapeDtypeStruct((8, M_pad), jnp.float32),
        grid=grid,
        in_specs=[
            pl.BlockSpec((TM, F), lambda i: (i, 0)),
            pl.BlockSpec((F, H), lambda i: (0, 0)),     # resident weights
            pl.BlockSpec((1, H), lambda i: (0, 0)),
            pl.BlockSpec((8, H), lambda i: (0, 0)),
            pl.BlockSpec((1, 1), lambda i: (0, 0),
                         memory_space=pltpu.MemorySpace.SMEM),
        ],
        out_specs=pl.BlockSpec((8, TM), lambda i: (0, i)),
        compiler_params=pltpu.CompilerParams(
            dimension_semantics=("parallel",)),          # megacore split on v7x
        cost_estimate=pl.CostEstimate(
            flops=flops,
            transcendentals=8 * M_pad,
            bytes_accessed=bytes_accessed),
    )(x, w1b, b1r, w2t, b2s)

    return out_t[0, :M].reshape(B, S, 1)


def _torch_linear_init(key, fan_in, fan_out):
    # Mirrors torch.nn.Linear default init: U(-1/sqrt(fan_in), 1/sqrt(fan_in)).
    kw, kb = jax.random.split(key)
    bound = 1.0 / (fan_in ** 0.5)
    w = jax.random.uniform(kw, (fan_in, fan_out), jnp.float32, -bound, bound)
    b = jax.random.uniform(kb, (fan_out,), jnp.float32, -bound, bound)
    return w, b


if __name__ == "__main__":
    key = jax.random.PRNGKey(0)
    k_h, k_y, k_l1, k_l2 = jax.random.split(key, 4)

    B, S = 2, 8
    h_size, y_size, hidden = 32, 32, 64

    h = jax.random.normal(k_h, (B, S, h_size), dtype=jnp.float32)
    y = jax.random.normal(k_y, (B, S, y_size), dtype=jnp.float32)

    w1, b1 = _torch_linear_init(k_l1, h_size + y_size, hidden)
    w2, b2 = _torch_linear_init(k_l2, hidden, 1)

    out = discriminator_forward(h, y, w1, b1, w2, b2)
    out = jax.block_until_ready(out)
    assert out.shape == (B, S, 1)

    # Reference 1: same bf16 quantization of the streamed operands (f32 accumulate),
    # mirroring the PyTorch forward structure.
    y_cat = jnp.concatenate([h, y], axis=2).reshape(B * S, h_size + y_size)
    z_ref = jnp.dot(y_cat.astype(jnp.bfloat16), w1.astype(jnp.bfloat16),
                    preferred_element_type=jnp.float32) + b1
    z_ref = jnp.maximum(z_ref, 0.0)
    o_ref = jnp.dot(z_ref, w2, precision=lax.Precision.HIGHEST) + b2
    ref_q = (1.0 / (1.0 + jnp.exp(-o_ref))).reshape(B, S, 1)
    assert jnp.allclose(out, ref_q, atol=2e-3, rtol=1e-3), "mismatch vs bf16 reference"

    # Reference 2: exact f32 forward (loose tolerance: bf16 input quantization only).
    z32 = jnp.maximum(jnp.dot(y_cat, w1, precision=lax.Precision.HIGHEST) + b1, 0.0)
    ref_f32 = (1.0 / (1.0 + jnp.exp(-(jnp.dot(z32, w2, precision=lax.Precision.HIGHEST)
                                      + b2)))).reshape(B, S, 1)
    assert jnp.allclose(out, ref_f32, atol=2e-2), "mismatch vs f32 reference"

    print("KERNEL_OK")
</pallas_src>

<mosaic_0001>
module attributes {stable_mosaic.version = 11 : i64} {
  func.func @discriminator_kernel(%arg0: i32, %arg1: memref<128x64xbf16, #tpu.memory_space<vmem>>, %arg2: memref<64x64xbf16, #tpu.memory_space<vmem>>, %arg3: memref<1x64xf32, #tpu.memory_space<vmem>>, %arg4: memref<8x64xf32, #tpu.memory_space<vmem>>, %arg5: memref<1x1xf32, #tpu.memory_space<smem>>, %arg6: memref<8x128xf32, #tpu.memory_space<vmem>>) attributes {dimension_semantics = [#tpu.dimension_semantics<parallel>], iteration_bounds = array<i64: 1>, scalar_prefetch = 0 : i64, scratch_operands = 0 : i64, tpu.core_type = #tpu.core_type<tc>, window_params = [{transform_indices = @transform_0, window_bounds = array<i64: 128, 64>}, {pipeline_mode = #tpu.pipeline_mode<synchronous>, transform_indices = @transform_1, window_bounds = array<i64: 64, 64>}, {pipeline_mode = #tpu.pipeline_mode<synchronous>, transform_indices = @transform_2, window_bounds = array<i64: 1, 64>}, {pipeline_mode = #tpu.pipeline_mode<synchronous>, transform_indices = @transform_3, window_bounds = array<i64: 8, 64>}, {transform_indices = @transform_4, window_bounds = array<i64: 1, 1>}, {transform_indices = @transform_5, window_bounds = array<i64: 8, 128>}]} {
    %c0 = arith.constant 0 : index
    %c0_0 = arith.constant 0 : index
    %0 = vector.load %arg1[%c0, %c0_0] : memref<128x64xbf16, #tpu.memory_space<vmem>>, vector<128x64xbf16>
    %c0_1 = arith.constant 0 : index
    %c0_2 = arith.constant 0 : index
    %1 = vector.load %arg2[%c0_1, %c0_2] : memref<64x64xbf16, #tpu.memory_space<vmem>>, vector<64x64xbf16>
    %cst = arith.constant dense<0.000000e+00> : vector<128x64xf32>
    %2 = tpu.matmul %0, %1, %cst {dimension_numbers = #tpu.dot_dimension_numbers<[1], [0], [0], [1], [0, 0, 1, 1], [], []>} : vector<128x64xbf16>, vector<64x64xbf16>, vector<128x64xf32> -> vector<128x64xf32>
    %c0_3 = arith.constant 0 : index
    %c0_4 = arith.constant 0 : index
    %3 = vector.load %arg3[%c0_3, %c0_4] : memref<1x64xf32, #tpu.memory_space<vmem>>, vector<1x64xf32>
    %4 = vector.broadcast %3 : vector<1x64xf32> to vector<128x64xf32>
    %5 = arith.addf %2, %4 : vector<128x64xf32>
    %cst_5 = arith.constant 0.000000e+00 : f32
    %6 = vector.broadcast %cst_5 : f32 to vector<128x64xf32>
    %7 = arith.maximumf %5, %6 : vector<128x64xf32>
    %c0_6 = arith.constant 0 : index
    %c0_7 = arith.constant 0 : index
    %8 = vector.load %arg4[%c0_6, %c0_7] : memref<8x64xf32, #tpu.memory_space<vmem>>, vector<8x64xf32>
    %cst_8 = arith.constant dense<0.000000e+00> : vector<8x128xf32>
    %9 = tpu.matmul %8, %7, %cst_8 {dimension_numbers = #tpu.dot_dimension_numbers<[1], [1], [0], [0], [0, 0, 1, 0], [], []>} : vector<8x64xf32>, vector<128x64xf32>, vector<8x128xf32> -> vector<8x128xf32>
    %c0_9 = arith.constant 0 : index
    %c0_10 = arith.constant 0 : index
    %10 = memref.load %arg5[%c0_9, %c0_10] : memref<1x1xf32, #tpu.memory_space<smem>>
    %11 = vector.broadcast %10 : f32 to vector<8x128xf32>
    %12 = arith.addf %9, %11 : vector<8x128xf32>
    %cst_11 = arith.constant 0.000000e+00 : f32
    %13 = vector.broadcast %cst_11 : f32 to vector<8x128xf32>
    %14 = arith.subf %13, %12 : vector<8x128xf32>
    %15 = math.exp %14 : vector<8x128xf32>
    %cst_12 = arith.constant 1.000000e+00 : f32
    %16 = vector.broadcast %cst_12 : f32 to vector<8x128xf32>
    %17 = arith.addf %16, %15 : vector<8x128xf32>
    %18 = tpu.reciprocal %17 : vector<8x128xf32> -> vector<8x128xf32>
    %c0_13 = arith.constant 0 : index
    %c0_14 = arith.constant 0 : index
    %19 = vector.load %arg6[%c0_13, %c0_14] : memref<8x128xf32, #tpu.memory_space<vmem>>, vector<8x128xf32>
    tpu.vector_store %arg6[%c0_13, %c0_14], %18 {strides = array<i32>} : memref<8x128xf32, #tpu.memory_space<vmem>>, vector<8x128xf32>,
    return
  }
  func.func @transform_0(%arg0: i32) -> (i32, i32) {
    %c0_i32 = arith.constant 0 : i32
    %c0_i32_0 = arith.constant 0 : i32
    return %arg0, %c0_i32 : i32, i32
  }
  func.func @transform_1(%arg0: i32) -> (i32, i32) {
    %c0_i32 = arith.constant 0 : i32
    %c0_i32_0 = arith.constant 0 : i32
    %c0_i32_1 = arith.constant 0 : i32
    return %c0_i32, %c0_i32_0 : i32, i32
  }
  func.func @transform_2(%arg0: i32) -> (i32, i32) {
    %c0_i32 = arith.constant 0 : i32
    %c0_i32_0 = arith.constant 0 : i32
    %c0_i32_1 = arith.constant 0 : i32
    return %c0_i32, %c0_i32_0 : i32, i32
  }
  func.func @transform_3(%arg0: i32) -> (i32, i32) {
    %c0_i32 = arith.constant 0 : i32
    %c0_i32_0 = arith.constant 0 : i32
    %c0_i32_1 = arith.constant 0 : i32
    return %c0_i32, %c0_i32_0 : i32, i32
  }
  func.func @transform_4(%arg0: i32) -> (i32, i32) {
    %c0_i32 = arith.constant 0 : i32
    %c0_i32_0 = arith.constant 0 : i32
    %c0_i32_1 = arith.constant 0 : i32
    return %c0_i32, %c0_i32_0 : i32, i32
  }
  func.func @transform_5(%arg0: i32) -> (i32, i32) {
    %c0_i32 = arith.constant 0 : i32
    %c0_i32_0 = arith.constant 0 : i32
    return %c0_i32, %arg0 : i32, i32
  }
}

</mosaic_0001>

<llo_original>
// kernel: tpu_custom_call.1
$region0: #{tpu_custom_call.1}
  #allocation0 [shape = 'u32[]', space=smem, size = 0x4, offset = 0x4, fixed_abs, tag = 'smem constant byte address 0x4 - core index']
  #allocation1 [shape = 'u32[144,128]{1,0:T(1,128)}', space=vmem, size = 0x12000, scoped, tag = 'internal scratch']
  #allocation2 [shape = 'f32[1,1]{1,0:T(1,128)S(6)}', space=smem, size = 0x200, scoped, tag = 'scoped memory for tpu_custom_call.1']
  %s0 = inlined_call_operand.vmem [shape: bf16[128,64], index: 0, kind: input, shape index: {}]
  %s1 = inlined_call_operand.vmem [shape: bf16[64,64], index: 1, kind: input, shape index: {}]
  %s2 = inlined_call_operand.vmem [shape: f32[1,64], index: 2, kind: input, shape index: {}]
  %s3 = inlined_call_operand.vmem [shape: f32[8,64], index: 3, kind: input, shape index: {}]
  %s4 = inlined_call_operand.<no memory space> [shape: f32[1,1], index: 4, kind: input, shape index: {}]
  %s5 = inlined_call_operand.hbm [shape: f32[8,128], index: 5, kind: output, shape index: {}]
  %s6 = sld [smem:[#allocation0]]
  $region30: #{tpu_custom_call.1} parent=0
    _
  %s8 = ssub.s32 1, %s6
  %s9 = scalar_select 0, %s8, %s6
  %10 = sst [smem:[#allocation2]] %s4
  $region1: #{tpu_custom_call.1} parent=0
    #allocation3 [shape = 'u8[4096]{0}', space=vmem, size = 0x1000, scoped, tag = 'output window, operand 0, single buffered']
    #allocation4 [shape = 's32[1]{0}', space=sflag, size = 0x4, scoped, tag = 'scoped memory for tpu_custom_call.1']
    %11 = vsyncpa [#allocation4], 0
    // Predicated region
    $region2: #{tpu_custom_call.1} parent=1 // pred_check
      _
    $region3: #{tpu_custom_call.1} parent=1 // pred_check_branch
      %13 = sbr.rel (0) target = $region5
    $region4: #{tpu_custom_call.1} parent=1 // pred_region
      _
    $region5: #{tpu_custom_call.1} parent=1 // pred_fallthru
      _
    // Predicated region
    $region6: #{tpu_custom_call.1} parent=1 // pred_check
      _
    $region7: #{tpu_custom_call.1} parent=1 // pred_check_branch
      %15 = sbr.rel (0) target = $region9
    $region8: #{tpu_custom_call.1} parent=1 // pred_region
      _
    $region9: #{tpu_custom_call.1} parent=1 // pred_fallthru
      _
    // Predicated region
    $region10: #{tpu_custom_call.1} parent=1 // pred_check
      _
    $region11: #{tpu_custom_call.1} parent=1 // pred_check_branch
      %17 = sbr.rel (0) target = $region13
    $region12: #{tpu_custom_call.1} parent=1 // pred_region
      _
    $region13: #{tpu_custom_call.1} parent=1 // pred_fallthru
      _
    // Predicated region
    $region14: #{tpu_custom_call.1} parent=1 // pred_check
      _
    $region15: #{tpu_custom_call.1} parent=1 // pred_check_branch
      %19 = sbr.rel (0) target = $region17
    $region16: #{tpu_custom_call.1} parent=1 // pred_region
      _
    $region17: #{tpu_custom_call.1} parent=1 // pred_fallthru
      _
    // Predicated region
    $region18: #{tpu_custom_call.1} parent=1 // pred_check
      _
    $region19: #{tpu_custom_call.1} parent=1 // pred_check_branch
      %21 = sbr.rel (0) target = $region21
    $region20: #{tpu_custom_call.1} parent=1 // pred_region
      _
    $region21: #{tpu_custom_call.1} parent=1 // pred_fallthru
      _
    %v23 = vld [vmem:[%s0] sm:$0xf]
    %v24 = vld [vmem:[%s0 + $0x4] sm:$0xf]
    %v25 = vld [vmem:[%s0 + $0x8] sm:$0xf]
    %v26 = vld [vmem:[%s0 + $0xc] sm:$0xf]
    %v27 = vld [vmem:[%s0 + $0x10] sm:$0xf]
    %v28 = vld [vmem:[%s0 + $0x14] sm:$0xf]
    %v29 = vld [vmem:[%s0 + $0x18] sm:$0xf]
    %v30 = vld [vmem:[%s0 + $0x1c] sm:$0xf]
    %v31 = vld [vmem:[%s0 + $0x20] sm:$0xf]
    %v32 = vld [vmem:[%s0 + $0x24] sm:$0xf]
    %v33 = vld [vmem:[%s0 + $0x28] sm:$0xf]
    %v34 = vld [vmem:[%s0 + $0x2c] sm:$0xf]
    %v35 = vld [vmem:[%s0 + $0x30] sm:$0xf]
    %v36 = vld [vmem:[%s0 + $0x34] sm:$0xf]
    %v37 = vld [vmem:[%s0 + $0x38] sm:$0xf]
    %v38 = vld [vmem:[%s0 + $0x3c] sm:$0xf]
    %v39 = vld [vmem:[%s1] sm:$0xf]
    %v40 = vld [vmem:[%s1 + $0x4] sm:$0xf]
    %v41 = vld [vmem:[%s1 + $0x8] sm:$0xf]
    %v42 = vld [vmem:[%s1 + $0xc] sm:$0xf]
    %v43 = vld [vmem:[%s1 + $0x10] sm:$0xf]
    %v44 = vld [vmem:[%s1 + $0x14] sm:$0xf]
    %v45 = vld [vmem:[%s1 + $0x18] sm:$0xf]
    %v46 = vld [vmem:[%s1 + $0x1c] sm:$0xf]
    %v47 = vld [vmem:[%s2] sm:$0x1]
    %v49 = vlaneseq
    %v50 = vshrl.u32 %v49, 7
    %v51 = vsub.s32 0, %v50
    %v52 = vrot.slane %v47, %v51
    %v70 = vunpack.c.l.b16 %v23
    %v71 = vunpack.c.l.b16 %v24
    %v72 = vunpack.c.l.b16 %v25
    %v73 = vunpack.c.l.b16 %v26
    %v74 = vunpack.c.l.b16 %v27
    %v75 = vunpack.c.l.b16 %v28
    %v76 = vunpack.c.l.b16 %v29
    %v77 = vunpack.c.l.b16 %v30
    %v78 = vunpack.c.l.b16 %v31
    %v79 = vunpack.c.l.b16 %v32
    %v80 = vunpack.c.l.b16 %v33
    %v81 = vunpack.c.l.b16 %v34
    %v82 = vunpack.c.l.b16 %v35
    %v83 = vunpack.c.l.b16 %v36
    %v84 = vunpack.c.l.b16 %v37
    %v85 = vunpack.c.l.b16 %v38
    %v86 = vpack.c.b16 %v71, %v70
    %v87 = vpack.c.b16 %v73, %v72
    %v88 = vpack.c.b16 %v75, %v74
    %v89 = vpack.c.b16 %v77, %v76
    %v90 = vpack.c.b16 %v79, %v78
    %v91 = vpack.c.b16 %v81, %v80
    %v92 = vpack.c.b16 %v83, %v82
    %v93 = vpack.c.b16 %v85, %v84
    %v102 = vunpack.c.l.b16 %v39
    %v103 = vunpack.c.l.b16 %v40
    %v104 = vunpack.c.l.b16 %v41
    %v105 = vunpack.c.l.b16 %v42
    %v106 = vunpack.c.l.b16 %v43
    %v107 = vunpack.c.l.b16 %v44
    %v108 = vunpack.c.l.b16 %v45
    %v109 = vunpack.c.l.b16 %v46
    %v110 = vpack.c.b16 %v103, %v102
    %v111 = vpack.c.b16 %v105, %v104
    %v112 = vpack.c.b16 %v107, %v106
    %v113 = vpack.c.b16 %v109, %v108
    %vm118 = vcmask 523264
    %v120 = vsel %vm118, %v86, 0
    %v123 = vsel %vm118, %v87, 0
    %v126 = vsel %vm118, %v88, 0
    %v129 = vsel %vm118, %v89, 0
    %v132 = vsel %vm118, %v90, 0
    %v135 = vsel %vm118, %v91, 0
    %v138 = vsel %vm118, %v92, 0
    %v141 = vsel %vm118, %v93, 0
    %143 = vmatprep.subr.bf16.mxu0 0
    %144 = vmatpush1.bf16.msra.mxu0 %v110
    %145 = vmatprep.subr.bf16.mxu0 0
    %146 = vmatpush1.bf16.msra.mxu0 %v111
    %147 = vmatprep.subr.bf16.mxu0 0
    %148 = vmatpush1.bf16.msra.mxu0 %v112
    %149 = vmatprep.subr.bf16.mxu0 0
    %150 = vmatpush1.bf16.msra.mxu0 %v113
    %151 = vmatprep.subr.bf16.mxu0 0
    %152 = vmatpush1.bf16.msra.mxu0 0
    %153 = vmatprep.subr.bf16.mxu0 0
    %154 = vmatpush1.bf16.msra.mxu0 0
    %155 = vmatprep.subr.bf16.mxu0 0
    %156 = vmatpush1.bf16.msra.mxu0 0
    %157 = vmatprep.subr.bf16.mxu0 0
    %158 = vmatpush1.bf16.msra.mxu0 0
    %159 = vmatprep.subr.bf16.mxu0 0
    %160 = vmatpush1.bf16.msra.mxu0 0
    %161 = vmatprep.subr.bf16.mxu0 0
    %162 = vmatpush1.bf16.msra.mxu0 0
    %163 = vmatprep.subr.bf16.mxu0 0
    %164 = vmatpush1.bf16.msra.mxu0 0
    %165 = vmatprep.subr.bf16.mxu0 0
    %166 = vmatpush1.bf16.msra.mxu0 0
    %167 = vmatprep.subr.bf16.mxu0 0
    %168 = vmatpush1.bf16.msra.mxu0 0
    %169 = vmatprep.subr.bf16.mxu0 0
    %170 = vmatpush1.bf16.msra.mxu0 0
    %171 = vmatprep.subr.bf16.mxu0 0
    %172 = vmatpush1.bf16.msra.mxu0 0
    %173 = vmatprep.subr.bf16.mxu0 0
    %174 = vmatpush1.bf16.msra.mxu0 0
    %175 = vmatprep.mubr.bf16.mxu0 0
    %176 = vmatmul.mubr.bf16.gmra.mrb[0].mxu0 %v120
    %v177 = vpop.f32.mrb[0].mxu0
    %v178 = vadd.f32 %v52, %v177
    %v179 = vpop.f32.mrb[0].mxu0
    %v180 = vpop.f32.mrb[0].mxu0
    %v181 = vadd.f32 %v52, %v180
    %v182 = vpop.f32.mrb[0].mxu0
    %183 = vmatprep.mubr.bf16.mxu0 0
    %184 = vmatmul.mubr.bf16.gmra.mrb[0].mxu0 %v123
    %v185 = vpop.f32.mrb[0].mxu0
    %v186 = vadd.f32 %v52, %v185
    %v187 = vpop.f32.mrb[0].mxu0
    %v188 = vpop.f32.mrb[0].mxu0
    %v189 = vadd.f32 %v52, %v188
    %v190 = vpop.f32.mrb[0].mxu0
    %191 = vmatprep.mubr.bf16.mxu0 0
    %192 = vmatmul.mubr.bf16.gmra.mrb[0].mxu0 %v126
    %v193 = vpop.f32.mrb[0].mxu0
    %v194 = vadd.f32 %v52, %v193
    %v195 = vpop.f32.mrb[0].mxu0
    %v196 = vpop.f32.mrb[0].mxu0
    %v197 = vadd.f32 %v52, %v196
    %v198 = vpop.f32.mrb[0].mxu0
    %199 = vmatprep.mubr.bf16.mxu0 0
    %200 = vmatmul.mubr.bf16.gmra.mrb[0].mxu0 %v129
    %v201 = vpop.f32.mrb[0].mxu0
    %v202 = vadd.f32 %v52, %v201
    %v203 = vpop.f32.mrb[0].mxu0
    %v204 = vpop.f32.mrb[0].mxu0
    %v205 = vadd.f32 %v52, %v204
    %v206 = vpop.f32.mrb[0].mxu0
    %207 = vmatprep.mubr.bf16.mxu0 0
    %208 = vmatmul.mubr.bf16.gmra.mrb[0].mxu0 %v132
    %v209 = vpop.f32.mrb[0].mxu0
    %v210 = vadd.f32 %v52, %v209
    %v211 = vpop.f32.mrb[0].mxu0
    %v212 = vpop.f32.mrb[0].mxu0
    %v213 = vadd.f32 %v52, %v212
    %v214 = vpop.f32.mrb[0].mxu0
    %215 = vmatprep.mubr.bf16.mxu0 0
    %216 = vmatmul.mubr.bf16.gmra.mrb[0].mxu0 %v135
    %v217 = vpop.f32.mrb[0].mxu0
    %v218 = vadd.f32 %v52, %v217
    %v219 = vpop.f32.mrb[0].mxu0
    %v220 = vpop.f32.mrb[0].mxu0
    %v221 = vadd.f32 %v52, %v220
    %v222 = vpop.f32.mrb[0].mxu0
    %223 = vmatprep.mubr.bf16.mxu0 0
    %224 = vmatmul.mubr.bf16.gmra.mrb[0].mxu0 %v138
    %v225 = vpop.f32.mrb[0].mxu0
    %v226 = vadd.f32 %v52, %v225
    %v227 = vpop.f32.mrb[0].mxu0
    %v228 = vpop.f32.mrb[0].mxu0
    %v229 = vadd.f32 %v52, %v228
    %v230 = vpop.f32.mrb[0].mxu0
    %231 = vmatprep.mubr.bf16.mxu0 0
    %232 = vmatmul.mubr.bf16.gmra.mrb[0].mxu0 %v141
    %v233 = vpop.f32.mrb[0].mxu0
    %v234 = vadd.f32 %v52, %v233
    %v235 = vpop.f32.mrb[0].mxu0
    %v236 = vpop.f32.mrb[0].mxu0
    %v237 = vadd.f32 %v52, %v236
    %v238 = vpop.f32.mrb[0].mxu0
    %239 = vdwg.mxu0
    %v240 = vmax.f32 %v178, 0.0
    %v241 = vmax.f32 %v181, 0.0
    %v242 = vmax.f32 %v186, 0.0
    %v243 = vmax.f32 %v189, 0.0
    %v244 = vmax.f32 %v194, 0.0
    %v245 = vmax.f32 %v197, 0.0
    %v246 = vmax.f32 %v202, 0.0
    %v247 = vmax.f32 %v205, 0.0
    %v248 = vmax.f32 %v210, 0.0
    %v249 = vmax.f32 %v213, 0.0
    %v250 = vmax.f32 %v218, 0.0
    %v251 = vmax.f32 %v221, 0.0
    %v252 = vmax.f32 %v226, 0.0
    %v253 = vmax.f32 %v229, 0.0
    %v254 = vmax.f32 %v234, 0.0
    %v255 = vmax.f32 %v237, 0.0
    %v256 = vld [vmem:[%s3] sm:$0xff]
    %s257 = sld [smem:[#allocation2]]
    %v258 = vstv %s257
    %v260 = vsel %vm118, %v256, 0
    %v263 = vsel %vm118, %v240, 0
    %v266 = vsel %vm118, %v241, 0
    %v269 = vsel %vm118, %v242, 0
    %v272 = vsel %vm118, %v243, 0
    %v275 = vsel %vm118, %v244, 0
    %v278 = vsel %vm118, %v245, 0
    %v281 = vsel %vm118, %v246, 0
    %v284 = vsel %vm118, %v247, 0
    %v287 = vsel %vm118, %v248, 0
    %v290 = vsel %vm118, %v249, 0
    %v293 = vsel %vm118, %v250, 0
    %v296 = vsel %vm118, %v251, 0
    %v299 = vsel %vm118, %v252, 0
    %v302 = vsel %vm118, %v253, 0
    %v305 = vsel %vm118, %v254, 0
    %v308 = vsel %vm118, %v255, 0
    %310 = vmatprep.subr.mxu0 0.0
    %311 = vmatpush1.xpose.msra.mxu0 %v263
    %312 = vmatprep.subr.mxu0 0.0
    %313 = vmatpush1.xpose.msra.mxu0 %v266
    %314 = vmatprep.subr.mxu0 0.0
    %315 = vmatpush1.xpose.msra.mxu0 %v269
    %316 = vmatprep.subr.mxu0 0.0
    %317 = vmatpush1.xpose.msra.mxu0 %v272
    %318 = vmatprep.subr.mxu0 0.0
    %319 = vmatpush1.xpose.msra.mxu0 %v275
    %320 = vmatprep.subr.mxu0 0.0
    %321 = vmatpush1.xpose.msra.mxu0 %v278
    %322 = vmatprep.subr.mxu0 0.0
    %323 = vmatpush1.xpose.msra.mxu0 %v281
    %324 = vmatprep.subr.mxu0 0.0
    %325 = vmatpush1.xpose.msra.mxu0 %v284
    %326 = vmatprep.subr.mxu0 0.0
    %327 = vmatpush1.xpose.msra.mxu0 %v287
    %328 = vmatprep.subr.mxu0 0.0
    %329 = vmatpush1.xpose.msra.mxu0 %v290
    %330 = vmatprep.subr.mxu0 0.0
    %331 = vmatpush1.xpose.msra.mxu0 %v293
    %332 = vmatprep.subr.mxu0 0.0
    %333 = vmatpush1.xpose.msra.mxu0 %v296
    %334 = vmatprep.subr.mxu0 0.0
    %335 = vmatpush1.xpose.msra.mxu0 %v299
    %336 = vmatprep.subr.mxu0 0.0
    %337 = vmatpush1.xpose.msra.mxu0 %v302
    %338 = vmatprep.subr.mxu0 0.0
    %339 = vmatpush1.xpose.msra.mxu0 %v305
    %340 = vmatprep.subr.mxu0 0.0
    %341 = vmatpush1.xpose.msra.mxu0 %v308
    %342 = vmatprep.subr.mxu0 0.0
    %343 = vmatpush1.xpose.msra.mxu0 0.0
    %344 = vmatprep.subr.mxu0 0.0
    %345 = vmatpush1.xpose.msra.mxu0 0.0
    %346 = vmatprep.subr.mxu0 0.0
    %347 = vmatpush1.xpose.msra.mxu0 0.0
    %348 = vmatprep.subr.mxu0 0.0
    %349 = vmatpush1.xpose.msra.mxu0 0.0
    %350 = vmatprep.subr.mxu0 0.0
    %351 = vmatpush1.xpose.msra.mxu0 0.0
    %352 = vmatprep.subr.mxu0 0.0
    %353 = vmatpush1.xpose.msra.mxu0 0.0
    %354 = vmatprep.subr.mxu0 0.0
    %355 = vmatpush1.xpose.msra.mxu0 0.0
    %356 = vmatprep.subr.mxu0 0.0
    %357 = vmatpush1.xpose.msra.mxu0 0.0
    %358 = vmatprep.subr.mxu0 0.0
    %359 = vmatpush1.xpose.msra.mxu0 0.0
    %360 = vmatprep.subr.mxu0 0.0
    %361 = vmatpush1.xpose.msra.mxu0 0.0
    %362 = vmatprep.subr.mxu0 0.0
    %363 = vmatpush1.xpose.msra.mxu0 0.0
    %364 = vmatprep.subr.mxu0 0.0
    %365 = vmatpush1.xpose.msra.mxu0 0.0
    %366 = vmatprep.subr.mxu0 0.0
    %367 = vmatpush1.xpose.msra.mxu0 0.0
    %368 = vmatprep.subr.mxu0 0.0
    %369 = vmatpush1.xpose.msra.mxu0 0.0
    %370 = vmatprep.subr.mxu0 0.0
    %371 = vmatpush1.xpose.msra.mxu0 0.0
    %372 = vmatprep.subr.mxu0 0.0
    %373 = vmatpush1.xpose.msra.mxu0 0.0
    %374 = vmatprep.mubr.f32.mxu0 0.0
    %375 = vmatmul.mubr.f32.gmra.mrb[0].mxu0 %v260
    %v376 = vpop.f32.mrb[0].mxu0
    %v377 = vadd.f32 %v258, %v376
    %v378 = vpop.f32.mrb[0].mxu0
    %379 = vdwg.mxu0
    %v380 = vsub.f32 0.0, %v377
    %v381 = vmul.f32 %v380, 1.442695
    %v382 = vpow.pop %v381
    %v383 = vadd.f32 %v382, 1.0
    %v384 = vrcp.pop %v383
    %385 = vst [vmem:[#allocation3] sm:$0xff] %v384
    // Predicated region
    $region22: #{tpu_custom_call.1} parent=1 // pred_check
      _
    $region23: #{tpu_custom_call.1} parent=1 // pred_check_branch
      %387 = sbr.rel (0) target = $region25
    $region24: #{tpu_custom_call.1} parent=1 // pred_region
      %s389 = ssub.s32 128, 128
      %390 = vsyncadd [#allocation4], %s389
      %s392 = sshll.u32 [#allocation3], 4
      %s393 = int_to_ptr.vmem [resolvable:$true] %s392
      %395 = dma.vmem_to_hbm [thread:$0]  %s393, 128, %s5, [#allocation4]
    $region25: #{tpu_custom_call.1} parent=1 // pred_fallthru
      _
    // Predicated region
    $region26: #{tpu_custom_call.1} parent=1 // pred_check
      _
    $region27: #{tpu_custom_call.1} parent=1 // pred_check_branch
      %397 = sbr.rel (0) target = $region29
    $region28: #{tpu_custom_call.1} parent=1 // pred_region
      %398 = dma.done [#allocation4], 128
    $region29: #{tpu_custom_call.1} parent=1 // pred_fallthru
      _
    %399 = vsyncpa [#allocation4], 1

</llo_original>
